<compile_context>
chip_gen: v5e
topology: v5e:2x2
jax: 0.10.0
libtpu: 0.0.40
codegen_flags: <defaults>
</compile_context>

<pallas_src>
import jax
import jax.numpy as jnp
from jax import lax
from jax.experimental import pallas as pl
from jax.experimental.pallas import tpu as pltpu


def _xpos_kernel(cq_ref, sq_ref, ck_ref, sk_ref, q_ref, k_ref, qo_ref, ko_ref):
    # Tables: (R, C) f32, VMEM-resident across the whole grid (constant index_map).
    cq = cq_ref[...]
    sq = sq_ref[...]
    ck = ck_ref[...]
    sk = sk_ref[...]

    # Lane parity (head-dim pairs are adjacent on the lane axis).
    lane = lax.broadcasted_iota(jnp.int32, cq.shape, 1)
    is_even = (lane % 2) == 0

    def pair_swap(x):
        # out[..., d] = x[..., d+1] if d even else x[..., d-1]
        # (wrap-around lanes are masked out by the parity select; sign is already
        #  folded into the sq/sk tables so no negation is needed here)
        nxt = jnp.roll(x, -1, axis=-1)
        prv = jnp.roll(x, 1, axis=-1)
        return jnp.where(is_even, nxt, prv)

    q = q_ref[...].astype(jnp.float32)
    k = k_ref[...].astype(jnp.float32)

    qo_ref[...] = (q * cq + pair_swap(q) * sq).astype(qo_ref.dtype)
    ko_ref[...] = (k * ck + pair_swap(k) * sk).astype(ko_ref.dtype)


def _lane_layout(S, D):
    """Pick a lane-dense (R, C) view of an (S, D) slab."""
    if D % 128 == 0:
        return S, D
    if (S * D) % 128 == 0:
        return (S * D) // 128, 128
    return S, D  # fallback: masked stores, still correct


def _pick_block_heads(n_heads, bytes_per_head, target_bytes=2 << 20):
    """Largest divisor of n_heads with block <= target, keeping >= 2 grid steps."""
    if n_heads <= 1:
        return 1
    best = 1
    for d in range(1, n_heads + 1):
        if n_heads % d:
            continue
        if n_heads // d < 2:  # keep grid length >= 2 for 2-TC / megacore sharding
            continue
        if d * bytes_per_head <= target_bytes:
            best = d
    return best


def _build_tables(S, D, scale_base):
    """f32 tables (S, D): cq, sq, ck, sk with the rotate sign folded into sq/sk."""
    half = jnp.arange(0, D, 2, dtype=jnp.float32)
    inv_freq = 1.0 / (10000.0 ** (half / D))                    # (D/2,)
    base_scale = (half + 0.4 * D) / (1.4 * D)                   # (D/2,)
    seq = jnp.arange(S, dtype=jnp.float32)[:, None]             # (S, 1)
    power = (seq - (S // 2)) / jnp.float32(scale_base)          # (S, 1)
    scale = base_scale[None, :] ** power                        # (S, D/2)
    freqs = seq * inv_freq[None, :]                             # (S, D/2)
    sin = jnp.sin(freqs)
    cos = jnp.cos(freqs)

    def ri(t):  # repeat-interleave along head dim: (S, D/2) -> (S, D)
        return jnp.repeat(t, 2, axis=-1)

    # sign[-1, +1, -1, +1, ...]: even lanes of rotate_every_two carry -x[d+1]
    sign = jnp.tile(jnp.array([-1.0, 1.0], dtype=jnp.float32), D // 2)

    cq = ri(cos * scale)
    sq = ri(sin * scale) * sign
    ck = ri(cos / scale)
    sk = ri(sin / scale) * sign
    return cq, sq, ck, sk


def xpos_pallas(q, k, scale_base=512, block_heads=None):
    B, H, S, D = q.shape
    assert k.shape == (B, H, S, D)
    assert D % 2 == 0

    n_heads = B * H
    R, C = _lane_layout(S, D)
    itemsize = jnp.dtype(q.dtype).itemsize
    bytes_per_head = R * C * itemsize

    hb = block_heads if block_heads is not None else _pick_block_heads(
        n_heads, bytes_per_head)
    assert n_heads % hb == 0

    # Precompute tables once (host/XLA side), in the same lane-dense layout.
    cq, sq, ck, sk = _build_tables(S, D, scale_base)
    cq, sq, ck, sk = (t.reshape(R, C) for t in (cq, sq, ck, sk))

    qf = q.reshape(n_heads, R, C)
    kf = k.reshape(n_heads, R, C)

    # Explicit VMEM budget: q,k,qo,ko double-buffered blocks + 4 resident tables.
    block_bytes = hb * R * C * itemsize
    io_bytes = 4 * 2 * block_bytes
    tab_bytes = 4 * 2 * R * C * 4
    vmem_limit = int(min(56 << 20, max(io_bytes + tab_bytes + (4 << 20), 32 << 20)))

    table_spec = pl.BlockSpec((R, C), lambda i: (0, 0))
    qk_spec = pl.BlockSpec((hb, R, C), lambda i: (i, 0, 0))

    qo, ko = pl.pallas_call(
        _xpos_kernel,
        out_shape=(jax.ShapeDtypeStruct((n_heads, R, C), q.dtype),
                   jax.ShapeDtypeStruct((n_heads, R, C), k.dtype)),
        grid=(n_heads // hb,),
        in_specs=[table_spec, table_spec, table_spec, table_spec, qk_spec, qk_spec],
        out_specs=(qk_spec, qk_spec),
        compiler_params=pltpu.CompilerParams(
            dimension_semantics=("parallel",),
            vmem_limit_bytes=vmem_limit),
    )(cq, sq, ck, sk, qf, kf)

    return qo.reshape(B, H, S, D), ko.reshape(B, H, S, D)


def xpos_reference(q, k, scale_base=512):
    # Pure-JAX mirror of the PyTorch module (used for verification).
    D = q.shape[-1]
    S = q.shape[-2]
    scale_buf = (jnp.arange(0, D, 2, dtype=jnp.float32) + 0.4 * D) / (1.4 * D)
    inv_freq = 1.0 / 10000.0 ** (jnp.arange(0, D, 2, dtype=jnp.float32) / D)
    seq = jnp.arange(S, dtype=jnp.float32)[:, None]
    power = (seq - S // 2) / scale_base
    scale = scale_buf[None, :] ** power
    freqs = seq * inv_freq[None, :]
    sin, cos = jnp.sin(freqs), jnp.cos(freqs)

    def apply(x, scl):
        s = jnp.repeat(sin * scl, 2, axis=-1)
        c = jnp.repeat(cos * scl, 2, axis=-1)
        x1 = x[..., ::2]
        x2 = x[..., 1::2]
        rot = jnp.stack((-x2, x1), axis=-1).reshape(x.shape)
        return (x * c + rot * s).astype(x.dtype)

    return apply(q, scale), apply(k, 1.0 / scale)


if __name__ == "__main__":
    B, H, S, D = 2, 4, 16, 32  # head_dim = 32, scale_base = 512 (default)
    key = jax.random.PRNGKey(0)
    kq, kk = jax.random.split(key)
    q = jax.random.normal(kq, (B, H, S, D), dtype=jnp.float32)
    k = jax.random.normal(kk, (B, H, S, D), dtype=jnp.float32)

    q_out, k_out = xpos_pallas(q, k, scale_base=512)
    jax.block_until_ready((q_out, k_out))

    q_ref, k_ref = xpos_reference(q, k, scale_base=512)
    assert jnp.allclose(q_out, q_ref, atol=1e-4, rtol=1e-4), "q mismatch"
    assert jnp.allclose(k_out, k_ref, atol=1e-4, rtol=1e-4), "k mismatch"

    print("KERNEL_OK")
</pallas_src>

<mosaic_0001>
module attributes {stable_mosaic.version = 11 : i64} {
  func.func @_xpos_kernel(%arg0: i32, %arg1: memref<4x128xf32, #tpu.memory_space<vmem>>, %arg2: memref<4x128xf32, #tpu.memory_space<vmem>>, %arg3: memref<4x128xf32, #tpu.memory_space<vmem>>, %arg4: memref<4x128xf32, #tpu.memory_space<vmem>>, %arg5: memref<4x4x128xf32, #tpu.memory_space<vmem>>, %arg6: memref<4x4x128xf32, #tpu.memory_space<vmem>>, %arg7: memref<4x4x128xf32, #tpu.memory_space<vmem>>, %arg8: memref<4x4x128xf32, #tpu.memory_space<vmem>>) attributes {dimension_semantics = [#tpu.dimension_semantics<parallel>], iteration_bounds = array<i64: 2>, scalar_prefetch = 0 : i64, scratch_operands = 0 : i64, tpu.core_type = #tpu.core_type<tc>, window_params = [{pipeline_mode = #tpu.pipeline_mode<synchronous>, transform_indices = @transform_0, window_bounds = array<i64: 4, 128>}, {pipeline_mode = #tpu.pipeline_mode<synchronous>, transform_indices = @transform_1, window_bounds = array<i64: 4, 128>}, {pipeline_mode = #tpu.pipeline_mode<synchronous>, transform_indices = @transform_2, window_bounds = array<i64: 4, 128>}, {pipeline_mode = #tpu.pipeline_mode<synchronous>, transform_indices = @transform_3, window_bounds = array<i64: 4, 128>}, {transform_indices = @transform_4, window_bounds = array<i64: 4, 4, 128>}, {transform_indices = @transform_5, window_bounds = array<i64: 4, 4, 128>}, {transform_indices = @transform_6, window_bounds = array<i64: 4, 4, 128>}, {transform_indices = @transform_7, window_bounds = array<i64: 4, 4, 128>}]} {
    %c0 = arith.constant 0 : index
    %c0_0 = arith.constant 0 : index
    %0 = vector.load %arg1[%c0, %c0_0] : memref<4x128xf32, #tpu.memory_space<vmem>>, vector<4x128xf32>
    %c0_1 = arith.constant 0 : index
    %c0_2 = arith.constant 0 : index
    %1 = vector.load %arg2[%c0_1, %c0_2] : memref<4x128xf32, #tpu.memory_space<vmem>>, vector<4x128xf32>
    %c0_3 = arith.constant 0 : index
    %c0_4 = arith.constant 0 : index
    %2 = vector.load %arg3[%c0_3, %c0_4] : memref<4x128xf32, #tpu.memory_space<vmem>>, vector<4x128xf32>
    %c0_5 = arith.constant 0 : index
    %c0_6 = arith.constant 0 : index
    %3 = vector.load %arg4[%c0_5, %c0_6] : memref<4x128xf32, #tpu.memory_space<vmem>>, vector<4x128xf32>
    %4 = tpu.iota {dimensions = array<i32: 1>} : vector<4x128xi32>
    %c2_i32 = arith.constant 2 : i32
    %c0_i32 = arith.constant 0 : i32
    %5 = arith.cmpi eq, %c2_i32, %c0_i32 : i32
    %c1_i32 = arith.constant 1 : i32
    %6 = arith.select %5, %c1_i32, %c2_i32 : i32
    %7 = vector.broadcast %6 : i32 to vector<4x128xi32>
    %8 = arith.remsi %4, %7 : vector<4x128xi32>
    %c0_i32_7 = arith.constant 0 : i32
    %9 = vector.broadcast %c0_i32_7 : i32 to vector<4x128xi32>
    %10 = arith.cmpi ne, %8, %9 : vector<4x128xi32>
    %c0_i32_8 = arith.constant 0 : i32
    %11 = vector.broadcast %c0_i32_8 : i32 to vector<4x128xi32>
    %12 = arith.cmpi slt, %8, %11 : vector<4x128xi32>
    %c0_i32_9 = arith.constant 0 : i32
    %13 = arith.cmpi slt, %6, %c0_i32_9 : i32
    %14 = vector.broadcast %13 : i1 to vector<4x128xi1>
    %15 = vector.broadcast %14 : vector<4x128xi1> to vector<4x128xi1>
    %16 = arith.xori %12, %15 : vector<4x128xi1>
    %17 = arith.andi %16, %10 : vector<4x128xi1>
    %18 = vector.broadcast %6 : i32 to vector<4x128xi32>
    %19 = arith.addi %8, %18 : vector<4x128xi32>
    %20 = arith.select %17, %19, %8 : vector<4x128xi1>, vector<4x128xi32>
    %c0_i32_10 = arith.constant 0 : i32
    %21 = vector.broadcast %c0_i32_10 : i32 to vector<4x128xi32>
    %22 = arith.cmpi eq, %20, %21 : vector<4x128xi32>
    %c0_11 = arith.constant 0 : index
    %c0_12 = arith.constant 0 : index
    %c0_13 = arith.constant 0 : index
    %23 = vector.load %arg5[%c0_11, %c0_12, %c0_13] : memref<4x4x128xf32, #tpu.memory_space<vmem>>, vector<4x4x128xf32>
    %c0_14 = arith.constant 0 : index
    %c0_15 = arith.constant 0 : index
    %c0_16 = arith.constant 0 : index
    %24 = vector.load %arg6[%c0_14, %c0_15, %c0_16] : memref<4x4x128xf32, #tpu.memory_space<vmem>>, vector<4x4x128xf32>
    %25 = vector.shape_cast %0 : vector<4x128xf32> to vector<1x4x128xf32>
    %26 = vector.broadcast %25 : vector<1x4x128xf32> to vector<4x4x128xf32>
    %27 = arith.mulf %23, %26 : vector<4x4x128xf32>
    %28 = vector.extract_strided_slice %23 {offsets = [0, 0, 1], sizes = [4, 4, 127], strides = [1, 1, 1]} : vector<4x4x128xf32> to vector<4x4x127xf32>
    %29 = vector.extract_strided_slice %23 {offsets = [0, 0, 0], sizes = [4, 4, 1], strides = [1, 1, 1]} : vector<4x4x128xf32> to vector<4x4x1xf32>
    %30 = tpu.concatenate %28, %29 in 2 : vector<4x4x127xf32>, vector<4x4x1xf32> -> vector<4x4x128xf32>
    %31 = vector.extract_strided_slice %23 {offsets = [0, 0, 127], sizes = [4, 4, 1], strides = [1, 1, 1]} : vector<4x4x128xf32> to vector<4x4x1xf32>
    %32 = vector.extract_strided_slice %23 {offsets = [0, 0, 0], sizes = [4, 4, 127], strides = [1, 1, 1]} : vector<4x4x128xf32> to vector<4x4x127xf32>
    %33 = tpu.concatenate %31, %32 in 2 : vector<4x4x1xf32>, vector<4x4x127xf32> -> vector<4x4x128xf32>
    %34 = vector.shape_cast %22 : vector<4x128xi1> to vector<1x4x128xi1>
    %35 = vector.broadcast %34 : vector<1x4x128xi1> to vector<4x4x128xi1>
    %36 = arith.select %35, %30, %33 : vector<4x4x128xi1>, vector<4x4x128xf32>
    %37 = vector.shape_cast %1 : vector<4x128xf32> to vector<1x4x128xf32>
    %38 = vector.broadcast %37 : vector<1x4x128xf32> to vector<4x4x128xf32>
    %39 = arith.mulf %36, %38 : vector<4x4x128xf32>
    %40 = arith.addf %27, %39 : vector<4x4x128xf32>
    %c0_17 = arith.constant 0 : index
    %c0_18 = arith.constant 0 : index
    %c0_19 = arith.constant 0 : index
    %41 = vector.load %arg7[%c0_17, %c0_18, %c0_19] : memref<4x4x128xf32, #tpu.memory_space<vmem>>, vector<4x4x128xf32>
    tpu.vector_store %arg7[%c0_17, %c0_18, %c0_19], %40 {strides = array<i32>} : memref<4x4x128xf32, #tpu.memory_space<vmem>>, vector<4x4x128xf32>,
    %42 = vector.shape_cast %2 : vector<4x128xf32> to vector<1x4x128xf32>
    %43 = vector.broadcast %42 : vector<1x4x128xf32> to vector<4x4x128xf32>
    %44 = arith.mulf %24, %43 : vector<4x4x128xf32>
    %45 = vector.extract_strided_slice %24 {offsets = [0, 0, 1], sizes = [4, 4, 127], strides = [1, 1, 1]} : vector<4x4x128xf32> to vector<4x4x127xf32>
    %46 = vector.extract_strided_slice %24 {offsets = [0, 0, 0], sizes = [4, 4, 1], strides = [1, 1, 1]} : vector<4x4x128xf32> to vector<4x4x1xf32>
    %47 = tpu.concatenate %45, %46 in 2 : vector<4x4x127xf32>, vector<4x4x1xf32> -> vector<4x4x128xf32>
    %48 = vector.extract_strided_slice %24 {offsets = [0, 0, 127], sizes = [4, 4, 1], strides = [1, 1, 1]} : vector<4x4x128xf32> to vector<4x4x1xf32>
    %49 = vector.extract_strided_slice %24 {offsets = [0, 0, 0], sizes = [4, 4, 127], strides = [1, 1, 1]} : vector<4x4x128xf32> to vector<4x4x127xf32>
    %50 = tpu.concatenate %48, %49 in 2 : vector<4x4x1xf32>, vector<4x4x127xf32> -> vector<4x4x128xf32>
    %51 = vector.shape_cast %22 : vector<4x128xi1> to vector<1x4x128xi1>
    %52 = vector.broadcast %51 : vector<1x4x128xi1> to vector<4x4x128xi1>
    %53 = arith.select %52, %47, %50 : vector<4x4x128xi1>, vector<4x4x128xf32>
    %54 = vector.shape_cast %3 : vector<4x128xf32> to vector<1x4x128xf32>
    %55 = vector.broadcast %54 : vector<1x4x128xf32> to vector<4x4x128xf32>
    %56 = arith.mulf %53, %55 : vector<4x4x128xf32>
    %57 = arith.addf %44, %56 : vector<4x4x128xf32>
    %c0_20 = arith.constant 0 : index
    %c0_21 = arith.constant 0 : index
    %c0_22 = arith.constant 0 : index
    %58 = vector.load %arg8[%c0_20, %c0_21, %c0_22] : memref<4x4x128xf32, #tpu.memory_space<vmem>>, vector<4x4x128xf32>
    tpu.vector_store %arg8[%c0_20, %c0_21, %c0_22], %57 {strides = array<i32>} : memref<4x4x128xf32, #tpu.memory_space<vmem>>, vector<4x4x128xf32>,
    return
  }
  func.func @transform_0(%arg0: i32) -> (i32, i32) {
    %c0_i32 = arith.constant 0 : i32
    %c0_i32_0 = arith.constant 0 : i32
    %c0_i32_1 = arith.constant 0 : i32
    return %c0_i32, %c0_i32_0 : i32, i32
  }
  func.func @transform_1(%arg0: i32) -> (i32, i32) {
    %c0_i32 = arith.constant 0 : i32
    %c0_i32_0 = arith.constant 0 : i32
    %c0_i32_1 = arith.constant 0 : i32
    return %c0_i32, %c0_i32_0 : i32, i32
  }
  func.func @transform_2(%arg0: i32) -> (i32, i32) {
    %c0_i32 = arith.constant 0 : i32
    %c0_i32_0 = arith.constant 0 : i32
    %c0_i32_1 = arith.constant 0 : i32
    return %c0_i32, %c0_i32_0 : i32, i32
  }
  func.func @transform_3(%arg0: i32) -> (i32, i32) {
    %c0_i32 = arith.constant 0 : i32
    %c0_i32_0 = arith.constant 0 : i32
    %c0_i32_1 = arith.constant 0 : i32
    return %c0_i32, %c0_i32_0 : i32, i32
  }
  func.func @transform_4(%arg0: i32) -> (i32, i32, i32) {
    %c0_i32 = arith.constant 0 : i32
    %c0_i32_0 = arith.constant 0 : i32
    %c0_i32_1 = arith.constant 0 : i32
    return %arg0, %c0_i32, %c0_i32_0 : i32, i32, i32
  }
  func.func @transform_5(%arg0: i32) -> (i32, i32, i32) {
    %c0_i32 = arith.constant 0 : i32
    %c0_i32_0 = arith.constant 0 : i32
    %c0_i32_1 = arith.constant 0 : i32
    return %arg0, %c0_i32, %c0_i32_0 : i32, i32, i32
  }
  func.func @transform_6(%arg0: i32) -> (i32, i32, i32) {
    %c0_i32 = arith.constant 0 : i32
    %c0_i32_0 = arith.constant 0 : i32
    %c0_i32_1 = arith.constant 0 : i32
    return %arg0, %c0_i32, %c0_i32_0 : i32, i32, i32
  }
  func.func @transform_7(%arg0: i32) -> (i32, i32, i32) {
    %c0_i32 = arith.constant 0 : i32
    %c0_i32_0 = arith.constant 0 : i32
    %c0_i32_1 = arith.constant 0 : i32
    return %arg0, %c0_i32, %c0_i32_0 : i32, i32, i32
  }
}

</mosaic_0001>

<llo_original>
// kernel: tpu_custom_call.1
$region0: #{tpu_custom_call.1}
  #allocation0 [shape = 'u32[]', space=smem, size = 0x4, offset = 0x4, fixed_abs, tag = 'smem constant byte address 0x4 - core index']
  #allocation1 [shape = 'u32[72,128]{1,0:T(1,128)}', space=vmem, size = 0x9000, scoped, tag = 'internal scratch']
  %s0 = inlined_call_operand.hbm [shape: f32[4,128], index: 0, kind: input, shape index: {}]
  %s1 = inlined_call_operand.hbm [shape: f32[4,128], index: 1, kind: input, shape index: {}]
  %s2 = inlined_call_operand.hbm [shape: f32[4,128], index: 2, kind: input, shape index: {}]
  %s3 = inlined_call_operand.hbm [shape: f32[4,128], index: 3, kind: input, shape index: {}]
  %s4 = inlined_call_operand.hbm [shape: f32[8,4,128], index: 4, kind: input, shape index: {}]
  %s5 = inlined_call_operand.hbm [shape: f32[8,4,128], index: 5, kind: input, shape index: {}]
  %s6 = inlined_call_operand.hbm [shape: f32[8,4,128], index: 6, kind: output, shape index: {0}]
  %s7 = inlined_call_operand.hbm [shape: f32[8,4,128], index: 7, kind: output, shape index: {1}]
  %8 = xla_tuple %s6, %s7
  %s9 = sld [smem:[#allocation0]]
  $region89: #{tpu_custom_call.1} parent=0
    _
  %s11 = ssub.s32 1, %s9
  %s12 = scalar_select 0, %s11, %s9
  $region1: #{tpu_custom_call.1} parent=0
    #allocation2 [shape = 'u8[2048]{0}', space=vmem, size = 0x800, scoped, tag = 'input window, operand 0, single buffered']
    #allocation3 [shape = 's32[2]{0}', space=sflag, size = 0x8, scoped, tag = 'scoped memory for tpu_custom_call.1']
    #allocation4 [shape = 's32[2]{0}', space=sflag, size = 0x8, scoped, tag = 'scoped memory for tpu_custom_call.1']
    #allocation5 [shape = 'u8[2048]{0}', space=vmem, size = 0x800, scoped, tag = 'input window, operand 1, single buffered']
    #allocation6 [shape = 's32[1]{0}', space=sflag, size = 0x4, scoped, tag = 'scoped memory for tpu_custom_call.1']
    #allocation7 [shape = 'u8[2048]{0}', space=vmem, size = 0x800, scoped, tag = 'input window, operand 2, single buffered']
    #allocation8 [shape = 'u8[2048]{0}', space=vmem, size = 0x800, scoped, tag = 'input window, operand 3, single buffered']
    #allocation9 [shape = 's32[1]{0}', space=sflag, size = 0x4, scoped, tag = 'scoped memory for tpu_custom_call.1']
    #allocation10 [shape = 'u8[16384]{0}', space=vmem, size = 0x4000, scoped, tag = 'input window, operand 4']
    #allocation11 [shape = 'u8[16384]{0}', space=vmem, size = 0x4000, scoped, tag = 'input window, operand 5']
    #allocation12 [shape = 'u8[16384]{0}', space=vmem, size = 0x4000, scoped, tag = 'output window, operand 0']
    #allocation13 [shape = 'u8[16384]{0}', space=vmem, size = 0x4000, scoped, tag = 'output window, operand 1']
    #allocation14 [shape = 's32[2]{0}', space=sflag, size = 0x8, scoped, tag = 'scoped memory for tpu_custom_call.1']
    %13 = vsyncpa [#allocation3], 0
    %14 = vsyncpa [#allocation6], 0
    %15 = vsyncpa [#allocation9], 0
    %16 = vsyncpa [#allocation4], 0
    %s17 = scalar_lea.sflag [#allocation4], 1
    %18 = vsyncpa %s17, 0
    %19 = vsyncpa [#allocation14], 0
    %s20 = scalar_lea.sflag [#allocation14], 1
    %21 = vsyncpa %s20, 0
    loop: start=0, step=1, limit=4
    $region2: #{tpu_custom_call.1} parent=1 // loop_pre_header
      _
    $region3: #{tpu_custom_call.1} parent=1 // loop_header
      %s23 = sphi 0, %s27
      %p24 = scmp.ge.s32.totalorder %s23, 4
      %s31 = sphi 0, %s31
      %s33 = sphi 0, %s31
      %s34 = sphi 0, %s33
      %s48 = sphi 0, %s34
      %s52 = sphi 0, %s52
      %s54 = sphi 0, %s52
      %s55 = sphi 0, %s54
      %s69 = sphi 0, %s55
      %s73 = sphi 0, %s73
      %s75 = sphi 0, %s73
      %s76 = sphi 0, %s75
      %s90 = sphi 0, %s76
      %s94 = sphi 0, %s94
      %s96 = sphi 0, %s94
      %s97 = sphi 0, %s96
      %s111 = sphi 0, %s97
      %s117 = sphi 0, %s119
      %s120 = sphi 0, %s117
      %s121 = sphi 0, %s120
      %s137 = sphi 0, %s121
      %s143 = sphi 0, %s145
      %s146 = sphi 0, %s143
      %s147 = sphi 0, %s146
      %s163 = sphi 0, %s147
      %s169 = sphi 0, %s171
      %s172 = sphi 0, %s169
      %s173 = sphi 0, %s172
      %s189 = sphi 0, %s173
      %s195 = sphi 0, %s197
      %s198 = sphi 0, %s195
      %s199 = sphi 0, %s198
      %s215 = sphi 0, %s199
    $region4: #{tpu_custom_call.1} parent=1 // loop_header_branch
      %26 = sbr.rel (%p24) target = $region8
    $region5: #{tpu_custom_call.1} parent=1 // loop_body
      %s28 = ssub.s32 %s23, 1
      %s29 = ssub.s32 %s23, 2
      %s30 = sadd.s32 %s23, 1
      %s32 = sadd.s32 %s31, 1
      %p35 = scmp.eq.s32.totalorder %s23, 1
      %p36 = scmp.ne.s32.totalorder %s31, %s33
      %p37 = scmp.eq.s32.totalorder %s23, 0
      %p38 = por %p36, %p37
      %p39 = scmp.ne.s32.totalorder %s31, %s33
      %p40 = scmp.eq.s32.totalorder %s28, 1
      %p41 = por %p39, %p40
      %p42 = scmp.ne.s32.totalorder %s33, %s34
      %p43 = scmp.eq.s32.totalorder %s28, 0
      %p44 = por %p42, %p43
      %p45 = scmp.ne.s32.totalorder %s33, %s34
      %p46 = scmp.eq.s32.totalorder %s29, 1
      %p47 = por %p45, %p46
      %p49 = scmp.ne.s32.totalorder %s34, %s48
      %p50 = scmp.eq.s32.totalorder %s29, 0
      %p51 = por %p49, %p50
      %s53 = sadd.s32 %s52, 1
      %p56 = scmp.eq.s32.totalorder %s23, 1
      %p57 = scmp.ne.s32.totalorder %s52, %s54
      %p58 = scmp.eq.s32.totalorder %s23, 0
      %p59 = por %p57, %p58
      %p60 = scmp.ne.s32.totalorder %s52, %s54
      %p61 = scmp.eq.s32.totalorder %s28, 1
      %p62 = por %p60, %p61
      %p63 = scmp.ne.s32.totalorder %s54, %s55
      %p64 = scmp.eq.s32.totalorder %s28, 0
      %p65 = por %p63, %p64
      %p66 = scmp.ne.s32.totalorder %s54, %s55
      %p67 = scmp.eq.s32.totalorder %s29, 1
      %p68 = por %p66, %p67
      %p70 = scmp.ne.s32.totalorder %s55, %s69
      %p71 = scmp.eq.s32.totalorder %s29, 0
      %p72 = por %p70, %p71
      %s74 = sadd.s32 %s73, 1
      %p77 = scmp.eq.s32.totalorder %s23, 1
      %p78 = scmp.ne.s32.totalorder %s73, %s75
      %p79 = scmp.eq.s32.totalorder %s23, 0
      %p80 = por %p78, %p79
      %p81 = scmp.ne.s32.totalorder %s73, %s75
      %p82 = scmp.eq.s32.totalorder %s28, 1
      %p83 = por %p81, %p82
      %p84 = scmp.ne.s32.totalorder %s75, %s76
      %p85 = scmp.eq.s32.totalorder %s28, 0
      %p86 = por %p84, %p85
      %p87 = scmp.ne.s32.totalorder %s75, %s76
      %p88 = scmp.eq.s32.totalorder %s29, 1
      %p89 = por %p87, %p88
      %p91 = scmp.ne.s32.totalorder %s76, %s90
      %p92 = scmp.eq.s32.totalorder %s29, 0
      %p93 = por %p91, %p92
      %s95 = sadd.s32 %s94, 1
      %p98 = scmp.eq.s32.totalorder %s23, 1
      %p99 = scmp.ne.s32.totalorder %s94, %s96
      %p100 = scmp.eq.s32.totalorder %s23, 0
      %p101 = por %p99, %p100
      %p102 = scmp.ne.s32.totalorder %s94, %s96
      %p103 = scmp.eq.s32.totalorder %s28, 1
      %p104 = por %p102, %p103
      %p105 = scmp.ne.s32.totalorder %s96, %s97
      %p106 = scmp.eq.s32.totalorder %s28, 0
      %p107 = por %p105, %p106
      %p108 = scmp.ne.s32.totalorder %s96, %s97
      %p109 = scmp.eq.s32.totalorder %s29, 1
      %p110 = por %p108, %p109
      %p112 = scmp.ne.s32.totalorder %s97, %s111
      %p113 = scmp.eq.s32.totalorder %s29, 0
      %p114 = por %p112, %p113
      %s115 = ssub.s32 %s23, %s30
      %p116 = scmp.eq.s32.totalorder %s115, 0
      %s118 = sadd.s32 %s117, 1
      %s119 = scalar_select %p116, %s117, %s118
      %p122 = pneg %p116
      %p123 = scmp.eq.s32.totalorder %s23, 1
      %p124 = por %p122, %p123
      %p125 = scmp.ne.s32.totalorder %s117, %s120
      %p126 = scmp.eq.s32.totalorder %s23, 0
      %p127 = por %p125, %p126
      %p128 = scmp.ne.s32.totalorder %s117, %s120
      %p129 = scmp.eq.s32.totalorder %s28, 1
      %p130 = por %p128, %p129
      %p131 = scmp.ne.s32.totalorder %s120, %s121
      %p132 = scmp.eq.s32.totalorder %s28, 0
      %p133 = por %p131, %p132
      %p134 = scmp.ne.s32.totalorder %s120, %s121
      %p135 = scmp.eq.s32.totalorder %s29, 1
      %p136 = por %p134, %p135
      %p138 = scmp.ne.s32.totalorder %s121, %s137
      %p139 = scmp.eq.s32.totalorder %s29, 0
      %p140 = por %p138, %p139
      %s141 = ssub.s32 %s23, %s30
      %p142 = scmp.eq.s32.totalorder %s141, 0
      %s144 = sadd.s32 %s143, 1
      %s145 = scalar_select %p142, %s143, %s144
      %p148 = pneg %p142
      %p149 = scmp.eq.s32.totalorder %s23, 1
      %p150 = por %p148, %p149
      %p151 = scmp.ne.s32.totalorder %s143, %s146
      %p152 = scmp.eq.s32.totalorder %s23, 0
      %p153 = por %p151, %p152
      %p154 = scmp.ne.s32.totalorder %s143, %s146
      %p155 = scmp.eq.s32.totalorder %s28, 1
      %p156 = por %p154, %p155
      %p157 = scmp.ne.s32.totalorder %s146, %s147
      %p158 = scmp.eq.s32.totalorder %s28, 0
      %p159 = por %p157, %p158
      %p160 = scmp.ne.s32.totalorder %s146, %s147
      %p161 = scmp.eq.s32.totalorder %s29, 1
      %p162 = por %p160, %p161
      %p164 = scmp.ne.s32.totalorder %s147, %s163
      %p165 = scmp.eq.s32.totalorder %s29, 0
      %p166 = por %p164, %p165
      %s167 = ssub.s32 %s23, %s30
      %p168 = scmp.eq.s32.totalorder %s167, 0
      %s170 = sadd.s32 %s169, 1
      %s171 = scalar_select %p168, %s169, %s170
      %p174 = pneg %p168
      %p175 = scmp.eq.s32.totalorder %s23, 1
      %p176 = por %p174, %p175
      %p177 = scmp.ne.s32.totalorder %s169, %s172
      %p178 = scmp.eq.s32.totalorder %s23, 0
      %p179 = por %p177, %p178
      %p180 = scmp.ne.s32.totalorder %s169, %s172
      %p181 = scmp.eq.s32.totalorder %s28, 1
      %p182 = por %p180, %p181
      %p183 = scmp.ne.s32.totalorder %s172, %s173
      %p184 = scmp.eq.s32.totalorder %s28, 0
      %p185 = por %p183, %p184
      %p186 = scmp.ne.s32.totalorder %s172, %s173
      %p187 = scmp.eq.s32.totalorder %s29, 1
      %p188 = por %p186, %p187
      %p190 = scmp.ne.s32.totalorder %s173, %s189
      %p191 = scmp.eq.s32.totalorder %s29, 0
      %p192 = por %p190, %p191
      %s193 = ssub.s32 %s23, %s30
      %p194 = scmp.eq.s32.totalorder %s193, 0
      %s196 = sadd.s32 %s195, 1
      %s197 = scalar_select %p194, %s195, %s196
      %p200 = pneg %p194
      %p201 = scmp.eq.s32.totalorder %s23, 1
      %p202 = por %p200, %p201
      %p203 = scmp.ne.s32.totalorder %s195, %s198
      %p204 = scmp.eq.s32.totalorder %s23, 0
      %p205 = por %p203, %p204
      %p206 = scmp.ne.s32.totalorder %s195, %s198
      %p207 = scmp.eq.s32.totalorder %s28, 1
      %p208 = por %p206, %p207
      %p209 = scmp.ne.s32.totalorder %s198, %s199
      %p210 = scmp.eq.s32.totalorder %s28, 0
      %p211 = por %p209, %p210
      %p212 = scmp.ne.s32.totalorder %s198, %s199
      %p213 = scmp.eq.s32.totalorder %s29, 1
      %p214 = por %p212, %p213
      %p216 = scmp.ne.s32.totalorder %s199, %s215
      %p217 = scmp.eq.s32.totalorder %s29, 0
      %p218 = por %p216, %p217
      %p219 = scmp.le.s32.totalorder 1, %s23
      %p220 = scmp.lt.s32.totalorder %s23, 3
      %p221 = pnand %p219, %p220
      %p222 = pneg %p221
      // Predicated region
      $region9: #{tpu_custom_call.1} parent=5 // pred_check
        _
      $region10: #{tpu_custom_call.1} parent=5 // pred_check_branch
        %224 = sbr.rel (%p221) target = $region12
      $region11: #{tpu_custom_call.1} parent=5 // pred_region
        %s225 = ssub.s32 %s23, 1
        // Predicated region
        $region13: #{tpu_custom_call.1} parent=11 // pred_check
          %p226 = pneg %p44
        $region14: #{tpu_custom_call.1} parent=11 // pred_check_branch
          %228 = sbr.rel (%p226) target = $region16
        $region15: #{tpu_custom_call.1} parent=11 // pred_region
          %230 = vsyncadd [#allocation3], 0
          %s232 = sshll.u32 %s0, 4
          %s233 = int_to_ptr.hbm [resolvable:$true] %s232
          %s234 = sshll.u32 [#allocation2], 4
          %s235 = int_to_ptr.vmem [resolvable:$true] %s234
          %237 = dma.hbm_to_vmem [thread:$0]  %s233, 64, %s235, [#allocation3]
        $region16: #{tpu_custom_call.1} parent=11 // pred_fallthru
          _
        // Predicated region
        $region17: #{tpu_custom_call.1} parent=11 // pred_check
          %p238 = pneg %p65
        $region18: #{tpu_custom_call.1} parent=11 // pred_check_branch
          %240 = sbr.rel (%p238) target = $region20
        $region19: #{tpu_custom_call.1} parent=11 // pred_region
          %242 = vsyncadd [#allocation6], 0
          %s244 = sshll.u32 %s1, 4
          %s245 = int_to_ptr.hbm [resolvable:$true] %s244
          %s246 = sshll.u32 [#allocation5], 4
          %s247 = int_to_ptr.vmem [resolvable:$true] %s246
          %249 = dma.hbm_to_vmem [thread:$0]  %s245, 64, %s247, [#allocation6]
        $region20: #{tpu_custom_call.1} parent=11 // pred_fallthru
          _
        // Predicated region
        $region21: #{tpu_custom_call.1} parent=11 // pred_check
          %p250 = pneg %p86
        $region22: #{tpu_custom_call.1} parent=11 // pred_check_branch
          %252 = sbr.rel (%p250) target = $region24
        $region23: #{tpu_custom_call.1} parent=11 // pred_region
          %254 = vsyncadd [#allocation6], 0
          %s256 = sshll.u32 %s2, 4
          %s257 = int_to_ptr.hbm [resolvable:$true] %s256
          %s258 = sshll.u32 [#allocation7], 4
          %s259 = int_to_ptr.vmem [resolvable:$true] %s258
          %261 = dma.hbm_to_vmem [thread:$0]  %s257, 64, %s259, [#allocation6]
        $region24: #{tpu_custom_call.1} parent=11 // pred_fallthru
          _
        // Predicated region
        $region25: #{tpu_custom_call.1} parent=11 // pred_check
          %p262 = pneg %p107
        $region26: #{tpu_custom_call.1} parent=11 // pred_check_branch
          %264 = sbr.rel (%p262) target = $region28
        $region27: #{tpu_custom_call.1} parent=11 // pred_region
          %266 = vsyncadd [#allocation9], 0
          %s268 = sshll.u32 %s3, 4
          %s269 = int_to_ptr.hbm [resolvable:$true] %s268
          %s270 = sshll.u32 [#allocation8], 4
          %s271 = int_to_ptr.vmem [resolvable:$true] %s270
          %273 = dma.hbm_to_vmem [thread:$0]  %s269, 64, %s271, [#allocation9]
        $region28: #{tpu_custom_call.1} parent=11 // pred_fallthru
          _
      $region12: #{tpu_custom_call.1} parent=5 // pred_fallthru
        _
      %p274 = scmp.lt.s32.totalorder %s23, 2
      // Predicated region
      $region29: #{tpu_custom_call.1} parent=5 // pred_check
        %p275 = pneg %p274
      $region30: #{tpu_custom_call.1} parent=5 // pred_check_branch
        %277 = sbr.rel (%p275) target = $region32
      $region31: #{tpu_custom_call.1} parent=5 // pred_region
        // Predicated region
        $region33: #{tpu_custom_call.1} parent=31 // pred_check
          %p278 = pneg %p127
        $region34: #{tpu_custom_call.1} parent=31 // pred_check_branch
          %280 = sbr.rel (%p278) target = $region36
        $region35: #{tpu_custom_call.1} parent=31 // pred_region
          %s281 = sand.u32 %s23, 1
          %s282 = scalar_lea.sflag [#allocation3], %s281
          %s283 = sand.u32 %s117, 1
          %s284 = smul.addr %s283, 16
          %s285 = scalar_lea.vmem [#allocation10], %s284
          %s286 = smul.u32 4, %s23
          %288 = vsyncadd %s282, 0
          %s289 = smul.addr %s286, 4
          %s290 = scalar_lea.hbm %s4, %s289
          %s291 = sshll.u32 %s290, 4
          %s292 = int_to_ptr.hbm [resolvable:$true] %s291
          %s293 = sshll.u32 %s285, 4
          %s294 = int_to_ptr.vmem [resolvable:$true] %s293
          %299 = dma.hbm_to_vmem [thread:$0]  %s292, 256, %s294, %s282, 64, 64, 4
        $region36: #{tpu_custom_call.1} parent=31 // pred_fallthru
          _
        // Predicated region
        $region37: #{tpu_custom_call.1} parent=31 // pred_check
          %p300 = pneg %p153
        $region38: #{tpu_custom_call.1} parent=31 // pred_check_branch
          %302 = sbr.rel (%p300) target = $region40
        $region39: #{tpu_custom_call.1} parent=31 // pred_region
          %s303 = sand.u32 %s23, 1
          %s304 = scalar_lea.sflag [#allocation3], %s303
          %s305 = sand.u32 %s143, 1
          %s306 = smul.addr %s305, 16
          %s307 = scalar_lea.vmem [#allocation11], %s306
          %s308 = smul.u32 4, %s23
          %310 = vsyncadd %s304, 0
          %s311 = smul.addr %s308, 4
          %s312 = scalar_lea.hbm %s5, %s311
          %s313 = sshll.u32 %s312, 4
          %s314 = int_to_ptr.hbm [resolvable:$true] %s313
          %s315 = sshll.u32 %s307, 4
          %s316 = int_to_ptr.vmem [resolvable:$true] %s315
          %321 = dma.hbm_to_vmem [thread:$0]  %s314, 256, %s316, %s304, 64, 64, 4
        $region40: #{tpu_custom_call.1} parent=31 // pred_fallthru
          _
      $region32: #{tpu_custom_call.1} parent=5 // pred_fallthru
        _
      %p322 = scmp.le.s32.totalorder 1, %s23
      %p323 = scmp.lt.s32.totalorder %s23, 3
      %p324 = pnand %p322, %p323
      %p325 = pneg %p324
      // Predicated region
      $region41: #{tpu_custom_call.1} parent=5 // pred_check
        _
      $region42: #{tpu_custom_call.1} parent=5 // pred_check_branch
        %327 = sbr.rel (%p324) target = $region44
      $region43: #{tpu_custom_call.1} parent=5 // pred_region
        %s328 = ssub.s32 %s23, 1
        // Predicated region
        $region45: #{tpu_custom_call.1} parent=43 // pred_check
          %p329 = pneg %p44
        $region46: #{tpu_custom_call.1} parent=43 // pred_check_branch
          %331 = sbr.rel (%p329) target = $region48
        $region47: #{tpu_custom_call.1} parent=43 // pred_region
          %333 = dma.done [#allocation3], 64
        $region48: #{tpu_custom_call.1} parent=43 // pred_fallthru
          _
        // Predicated region
        $region49: #{tpu_custom_call.1} parent=43 // pred_check
          %p334 = pneg %p65
        $region50: #{tpu_custom_call.1} parent=43 // pred_check_branch
          %336 = sbr.rel (%p334) target = $region52
        $region51: #{tpu_custom_call.1} parent=43 // pred_region
          %338 = dma.done [#allocation6], 64
        $region52: #{tpu_custom_call.1} parent=43 // pred_fallthru
          _
        // Predicated region
        $region53: #{tpu_custom_call.1} parent=43 // pred_check
          %p339 = pneg %p86
        $region54: #{tpu_custom_call.1} parent=43 // pred_check_branch
          %341 = sbr.rel (%p339) target = $region56
        $region55: #{tpu_custom_call.1} parent=43 // pred_region
          %343 = dma.done [#allocation6], 64
        $region56: #{tpu_custom_call.1} parent=43 // pred_fallthru
          _
        // Predicated region
        $region57: #{tpu_custom_call.1} parent=43 // pred_check
          %p344 = pneg %p107
        $region58: #{tpu_custom_call.1} parent=43 // pred_check_branch
          %346 = sbr.rel (%p344) target = $region60
        $region59: #{tpu_custom_call.1} parent=43 // pred_region
          %348 = dma.done [#allocation9], 64
        $region60: #{tpu_custom_call.1} parent=43 // pred_fallthru
          _
        %s349 = sand.u32 %s28, 1
        %s350 = scalar_lea.sflag [#allocation3], %s349
        %s351 = sand.u32 %s120, 1
        %s352 = smul.addr %s351, 16
        %s353 = scalar_lea.vmem [#allocation10], %s352
        // Predicated region
        $region61: #{tpu_custom_call.1} parent=43 // pred_check
          %p354 = pneg %p133
        $region62: #{tpu_custom_call.1} parent=43 // pred_check_branch
          %356 = sbr.rel (%p354) target = $region64
        $region63: #{tpu_custom_call.1} parent=43 // pred_region
          %358 = dma.done %s350, 256
        $region64: #{tpu_custom_call.1} parent=43 // pred_fallthru
          _
        %s359 = sand.u32 %s28, 1
        %s360 = scalar_lea.sflag [#allocation3], %s359
        %s361 = sand.u32 %s146, 1
        %s362 = smul.addr %s361, 16
        %s363 = scalar_lea.vmem [#allocation11], %s362
        // Predicated region
        $region65: #{tpu_custom_call.1} parent=43 // pred_check
          %p364 = pneg %p159
        $region66: #{tpu_custom_call.1} parent=43 // pred_check_branch
          %366 = sbr.rel (%p364) target = $region68
        $region67: #{tpu_custom_call.1} parent=43 // pred_region
          %368 = dma.done %s360, 256
        $region68: #{tpu_custom_call.1} parent=43 // pred_fallthru
          _
        %p369 = pneg %p44
        %p370 = pneg %p41
        %p371 = pneg %p65
        %p372 = pneg %p62
        %p373 = pneg %p86
        %p374 = pneg %p83
        %p375 = pneg %p107
        %p376 = pneg %p104
        %s377 = sand.u32 %s28, 1
        %s378 = scalar_lea.sflag [#allocation3], %s377
        %s379 = sand.u32 %s120, 1
        %s380 = smul.addr %s379, 16
        %s381 = scalar_lea.vmem [#allocation10], %s380
        %p382 = pneg %p133
        %p383 = pneg %p130
        %s384 = sand.u32 %s28, 1
        %s385 = scalar_lea.sflag [#allocation3], %s384
        %s386 = sand.u32 %s146, 1
        %s387 = smul.addr %s386, 16
        %s388 = scalar_lea.vmem [#allocation11], %s387
        %p389 = pneg %p159
        %p390 = pneg %p156
        %p391 = pneg %p185
        %p392 = pneg %p182
        %s393 = sand.u32 %s172, 1
        %s394 = scalar_lea.sflag [#allocation4], %s393
        %s395 = sand.u32 %s172, 1
        %s396 = smul.addr %s395, 16
        %s397 = scalar_lea.vmem [#allocation12], %s396
        %p398 = pneg %p211
        %p399 = pneg %p208
        %s400 = sand.u32 %s198, 1
        %s401 = scalar_lea.sflag [#allocation14], %s400
        %s402 = sand.u32 %s198, 1
        %s403 = smul.addr %s402, 16
        %s404 = scalar_lea.vmem [#allocation13], %s403
        %s405 = smul.u32 4, %s28
        %s406 = smul.u32 4, %s28
        %s407 = smul.u32 4, %s28
        %s408 = smul.u32 4, %s28
        %v409 = vld [vmem:[#allocation2] sm:$0xf]
        %v410 = vld [vmem:[#allocation5] sm:$0xf]
        %v411 = vld [vmem:[#allocation7] sm:$0xf]
        %v412 = vld [vmem:[#allocation8] sm:$0xf]
        %v413 = vlaneseq
        %v414 = vand.u32 %v413, 127
        %vm415 = vcmp.lt.s32.totalorder %v414, 0
        %v416 = vsub.s32 0, %v414
        %v417 = vsel %vm415, %v416, %v414
        %v418 = vshrl.u32 %v417, 1
        %v419 = vand.u32 %v417, 1
        %v420 = vsub.s32 0, %v419
        %v421 = vsel %vm415, %v420, %v419
        %vm422 = vcmp.ne.s32.totalorder %v421, 0
        %vm423 = vcmp.lt.s32.totalorder %v421, 0
        %vm424 = vmand %vm423, %vm422
        %v425 = vadd.s32 %v421, 2
        %v426 = vsel %vm424, %v425, %v421
        %vm427 = vcmp.eq.s32.totalorder %v426, 0
        %v428 = vld [vmem:[%s353] sm:$0xf]
        %v429 = vld [vmem:[%s353 + $0x4] sm:$0xf]
        %v430 = vld [vmem:[%s353 + $0x8] sm:$0xf]
        %v431 = vld [vmem:[%s353 + $0xc] sm:$0xf]
        %v432 = vld [vmem:[%s363] sm:$0xf]
        %v433 = vld [vmem:[%s363 + $0x4] sm:$0xf]
        %v434 = vld [vmem:[%s363 + $0x8] sm:$0xf]
        %v435 = vld [vmem:[%s363 + $0xc] sm:$0xf]
        %v436 = vmul.f32 %v428, %v409
        %v437 = vmul.f32 %v429, %v409
        %v438 = vmul.f32 %v430, %v409
        %v439 = vmul.f32 %v431, %v409
        %444 = vrot.lane.b32.xlu0 %v428, 127
        %v445 = vpop.permute.xlu0 %444
        %446 = vrot.lane.b32.xlu0 %v429, 127
        %v447 = vpop.permute.xlu0 %446
        %448 = vrot.lane.b32.xlu0 %v430, 127
        %v449 = vpop.permute.xlu0 %448
        %450 = vrot.lane.b32.xlu0 %v431, 127
        %v451 = vpop.permute.xlu0 %450
        %456 = vrot.lane.b32.xlu0 %v428, 1
        %v457 = vpop.permute.xlu0 %456
        %458 = vrot.lane.b32.xlu0 %v429, 1
        %v459 = vpop.permute.xlu0 %458
        %460 = vrot.lane.b32.xlu0 %v430, 1
        %v461 = vpop.permute.xlu0 %460
        %462 = vrot.lane.b32.xlu0 %v431, 1
        %v463 = vpop.permute.xlu0 %462
        %v468 = vsel %vm427, 1, 0
        %vm469 = vcmp.eq.s32.totalorder %v468, 1
        %v470 = vsel %vm469, %v445, %v457
        %v471 = vsel %vm469, %v447, %v459
        %v472 = vsel %vm469, %v449, %v461
        %v473 = vsel %vm469, %v451, %v463
        %v474 = vmul.f32 %v470, %v410
        %v475 = vmul.f32 %v471, %v410
        %v476 = vmul.f32 %v472, %v410
        %v477 = vmul.f32 %v473, %v410
        %v478 = vadd.f32 %v436, %v474
        %v479 = vadd.f32 %v437, %v475
        %v480 = vadd.f32 %v438, %v476
        %v481 = vadd.f32 %v439, %v477
        %482 = vst [vmem:[%s397] sm:$0xf] %v478
        %483 = vst [vmem:[%s397 + $0x4] sm:$0xf] %v479
        %484 = vst [vmem:[%s397 + $0x8] sm:$0xf] %v480
        %485 = vst [vmem:[%s397 + $0xc] sm:$0xf] %v481
        %v486 = vmul.f32 %v432, %v411
        %v487 = vmul.f32 %v433, %v411
        %v488 = vmul.f32 %v434, %v411
        %v489 = vmul.f32 %v435, %v411
        %494 = vrot.lane.b32.xlu0 %v432, 127
        %v495 = vpop.permute.xlu0 %494
        %496 = vrot.lane.b32.xlu0 %v433, 127
        %v497 = vpop.permute.xlu0 %496
        %498 = vrot.lane.b32.xlu0 %v434, 127
        %v499 = vpop.permute.xlu0 %498
        %500 = vrot.lane.b32.xlu0 %v435, 127
        %v501 = vpop.permute.xlu0 %500
        %506 = vrot.lane.b32.xlu0 %v432, 1
        %v507 = vpop.permute.xlu0 %506
        %508 = vrot.lane.b32.xlu0 %v433, 1
        %v509 = vpop.permute.xlu0 %508
        %510 = vrot.lane.b32.xlu0 %v434, 1
        %v511 = vpop.permute.xlu0 %510
        %512 = vrot.lane.b32.xlu0 %v435, 1
        %v513 = vpop.permute.xlu0 %512
        %v518 = vsel %vm469, %v495, %v507
        %v519 = vsel %vm469, %v497, %v509
        %v520 = vsel %vm469, %v499, %v511
        %v521 = vsel %vm469, %v501, %v513
        %v522 = vmul.f32 %v518, %v412
        %v523 = vmul.f32 %v519, %v412
        %v524 = vmul.f32 %v520, %v412
        %v525 = vmul.f32 %v521, %v412
        %v526 = vadd.f32 %v486, %v522
        %v527 = vadd.f32 %v487, %v523
        %v528 = vadd.f32 %v488, %v524
        %v529 = vadd.f32 %v489, %v525
        %530 = vst [vmem:[%s404] sm:$0xf] %v526
        %531 = vst [vmem:[%s404 + $0x4] sm:$0xf] %v527
        %532 = vst [vmem:[%s404 + $0x8] sm:$0xf] %v528
        %533 = vst [vmem:[%s404 + $0xc] sm:$0xf] %v529
        %s534 = sand.u32 %s172, 1
        %s535 = scalar_lea.sflag [#allocation4], %s534
        %s536 = sand.u32 %s172, 1
        %s537 = smul.addr %s536, 16
        %s538 = scalar_lea.vmem [#allocation12], %s537
        %s539 = sand.u32 %s198, 1
        %s540 = scalar_lea.sflag [#allocation14], %s539
        %s541 = sand.u32 %s198, 1
        %s542 = smul.addr %s541, 16
        %s543 = scalar_lea.vmem [#allocation13], %s542
        // Predicated region
        $region69: #{tpu_custom_call.1} parent=43 // pred_check
          %p544 = pneg %p182
        $region70: #{tpu_custom_call.1} parent=43 // pred_check_branch
          %546 = sbr.rel (%p544) target = $region72
        $region71: #{tpu_custom_call.1} parent=43 // pred_region
          %s547 = smul.u32 4, %s28
          %549 = vsyncadd %s535, 0
          %s550 = smul.addr %s547, 4
          %s551 = scalar_lea.hbm %s6, %s550
          %s552 = sshll.u32 %s538, 4
          %s553 = int_to_ptr.vmem [resolvable:$true] %s552
          %s554 = sshll.u32 %s551, 4
          %s555 = int_to_ptr.hbm [resolvable:$true] %s554
          %560 = dma.vmem_to_hbm [thread:$0]  %s553, 256, %s555, %s535, 64, 64, 4
        $region72: #{tpu_custom_call.1} parent=43 // pred_fallthru
          _
        // Predicated region
        $region73: #{tpu_custom_call.1} parent=43 // pred_check
          %p561 = pneg %p208
        $region74: #{tpu_custom_call.1} parent=43 // pred_check_branch
          %563 = sbr.rel (%p561) target = $region76
        $region75: #{tpu_custom_call.1} parent=43 // pred_region
          %s564 = smul.u32 4, %s28
          %566 = vsyncadd %s540, 0
          %s567 = smul.addr %s564, 4
          %s568 = scalar_lea.hbm %s7, %s567
          %s569 = sshll.u32 %s543, 4
          %s570 = int_to_ptr.vmem [resolvable:$true] %s569
          %s571 = sshll.u32 %s568, 4
          %s572 = int_to_ptr.hbm [resolvable:$true] %s571
          %577 = dma.vmem_to_hbm [thread:$0]  %s570, 256, %s572, %s540, 64, 64, 4
        $region76: #{tpu_custom_call.1} parent=43 // pred_fallthru
          _
      $region44: #{tpu_custom_call.1} parent=5 // pred_fallthru
        _
      %p578 = scmp.le.s32.totalorder 2, %s23
      // Predicated region
      $region77: #{tpu_custom_call.1} parent=5 // pred_check
        %p579 = pneg %p578
      $region78: #{tpu_custom_call.1} parent=5 // pred_check_branch
        %581 = sbr.rel (%p579) target = $region80
      $region79: #{tpu_custom_call.1} parent=5 // pred_region
        %s582 = ssub.s32 %s23, 2
        // Predicated region
        $region81: #{tpu_custom_call.1} parent=79 // pred_check
          %p583 = pneg %p188
        $region82: #{tpu_custom_call.1} parent=79 // pred_check_branch
          %585 = sbr.rel (%p583) target = $region84
        $region83: #{tpu_custom_call.1} parent=79 // pred_region
          %s586 = sand.u32 %s173, 1
          %s587 = scalar_lea.sflag [#allocation4], %s586
          %s588 = sand.u32 %s173, 1
          %s589 = smul.addr %s588, 16
          %s590 = scalar_lea.vmem [#allocation12], %s589
          %592 = dma.done %s587, 256
        $region84: #{tpu_custom_call.1} parent=79 // pred_fallthru
          _
        // Predicated region
        $region85: #{tpu_custom_call.1} parent=79 // pred_check
          %p593 = pneg %p214
        $region86: #{tpu_custom_call.1} parent=79 // pred_check_branch
          %595 = sbr.rel (%p593) target = $region88
        $region87: #{tpu_custom_call.1} parent=79 // pred_region
          %s596 = sand.u32 %s199, 1
          %s597 = scalar_lea.sflag [#allocation14], %s596
          %s598 = sand.u32 %s199, 1
          %s599 = smul.addr %s598, 16
          %s600 = scalar_lea.vmem [#allocation13], %s599
          %602 = dma.done %s597, 256
        $region88: #{tpu_custom_call.1} parent=79 // pred_fallthru
          _
      $region80: #{tpu_custom_call.1} parent=5 // pred_fallthru
        _
    $region6: #{tpu_custom_call.1} parent=1 // loop_footer
      %s27 = sadd.s32 1, %s23
    $region7: #{tpu_custom_call.1} parent=1 // loop_footer_branch
      %22 = sbr.rel target = $region3
    $region8: #{tpu_custom_call.1} parent=1 // loop_exit
      _
    %603 = vsyncpa [#allocation3], 1
    %s604 = scalar_lea.sflag [#allocation3], 1
    %605 = vsyncpa %s604, 1
    %606 = vsyncpa [#allocation6], 1
    %607 = vsyncpa [#allocation9], 1
    %608 = vsyncpa [#allocation4], 1
    %s609 = scalar_lea.sflag [#allocation4], 1
    %610 = vsyncpa %s609, 1
    %611 = vsyncpa [#allocation14], 1
    %s612 = scalar_lea.sflag [#allocation14], 1
    %613 = vsyncpa %s612, 1

</llo_original>
